<compile_context>
chip_gen: v7x
topology: tpu7x:2x2x1
jax: 0.10.0
libtpu: 0.0.40
codegen_flags: <defaults>
</compile_context>

<pallas_src>
import jax
import jax.numpy as jnp
from jax.experimental import pallas as pl
from jax.experimental.pallas import tpu as pltpu

LANE = 128
SUBLANE = 8


def _round_up(x, m):
    return ((x + m - 1) // m) * m


def bow_kernel(labels_ref, len_ref, emb_ref, out_ref):
    # grid = (batch blocks, E blocks, vocab blocks); vocab (axis 2) is the reduction.
    k = pl.program_id(2)

    @pl.when(k == 0)
    def _():
        out_ref[...] = jnp.zeros_like(out_ref)      # out_ref is the f32 accumulator

    labels = labels_ref[...]                        # [BT, L] int32, vreg-resident
    BT, L = labels.shape
    VT = emb_ref.shape[0]

    # Hoist the k-dependent shift out of the compare: one subtract on [BT, L],
    # then compare against a k-invariant lane iota.
    local = labels - k * VT                         # [BT, L]
    lane_ids = jax.lax.broadcasted_iota(jnp.int32, (BT, VT), 1)

    # counts[b, v] = #{ l : local[b, l] == v } for v in [0, VT).
    zero = jnp.zeros((BT, VT), jnp.float32)
    if L <= 32:
        # Small static trip count: plain unroll is fine.
        counts = zero
        for l in range(L):
            counts = counts + (local[:, l:l + 1] == lane_ids).astype(jnp.float32)
    else:
        # Large L: fori_loop bounds vreg live ranges; partial unroll for LLO scheduling.
        def body(l, c):
            tok = jax.lax.dynamic_slice_in_dim(local, l, 1, axis=1)   # [BT, 1]
            return c + (tok == lane_ids).astype(jnp.float32)
        counts = jax.lax.fori_loop(0, L, body, zero, unroll=8)

    # counts <= L; bf16 is exact for integers <= 256 (8 mantissa bits).
    if L <= 256:
        counts = counts.astype(jnp.bfloat16)

    # Gather+sum fused as an MXU matmul; accumulate directly into the resident output.
    out_ref[...] += jnp.dot(counts, emb_ref[...],
                            preferred_element_type=jnp.float32)

    @pl.when(k == pl.num_programs(2) - 1)
    def _():
        # torch.div(sum.T, len).T -> exact reciprocal on [BT, 1], broadcast multiply.
        inv_len = pl.reciprocal(len_ref[...], approx=False)
        out_ref[...] = out_ref[...] * inv_len


def bow_forward(markdown_label, markdown_len, emb_table, *,
                b_tile=256, v_tile=512, e_tile=512,
                table_dtype=jnp.bfloat16):
    B, L = markdown_label.shape
    V, E = emb_table.shape

    # Clamp tiles to the aligned problem size so small problems don't over-pad,
    # while keeping (8, 128) alignment.
    b_tile = _round_up(min(b_tile, _round_up(B, SUBLANE)), SUBLANE)
    v_tile = _round_up(min(v_tile, _round_up(V, LANE)), LANE)
    e_tile = _round_up(min(e_tile, _round_up(E, LANE)), LANE)

    B_pad = _round_up(B, b_tile)
    V_pad = _round_up(V, v_tile)
    E_pad = _round_up(E, e_tile)

    labels = markdown_label.astype(jnp.int32)
    if B_pad != B:
        # Padded batch rows use token id 0 (always a valid row); their outputs are
        # computed but sliced away below, so padding_idx does not matter for them.
        labels = jnp.pad(labels, ((0, B_pad - B), (0, 0)))

    lens = markdown_len.reshape(-1).astype(jnp.float32)
    if B_pad != B:
        lens = jnp.pad(lens, (0, B_pad - B), constant_values=1.0)
    lens2d = lens.reshape(B_pad, 1)
    # NOTE: lengths stay a (b_tile, 1) VMEM block (read once, only in the finalize
    # branch); a full-vector SMEM->vreg load has no clean lowering.

    # bf16 table: MXU-native on v6e/v7x, half the HBM/VMEM traffic of f32.
    table = emb_table.astype(table_dtype)
    if V_pad != V or E_pad != E:
        table = jnp.pad(table, ((0, V_pad - V), (0, E_pad - E)))

    grid = (B_pad // b_tile, E_pad // e_tile, V_pad // v_tile)

    # Explicit VMEM budget: double-buffered inputs/outputs + 2x headroom,
    # clamped to stay inside v7x's 64 MiB physical VMEM.
    itemsize = jnp.dtype(table_dtype).itemsize
    vmem_est = 2 * (b_tile * L * 4            # labels
                    + b_tile * LANE * 4       # lengths (lane-padded)
                    + v_tile * e_tile * itemsize   # table tile
                    + b_tile * e_tile * 4)    # resident f32 output block
    vmem_limit = int(min(max(2 * vmem_est, 16 << 20), 48 << 20))

    out = pl.pallas_call(
        bow_kernel,
        out_shape=jax.ShapeDtypeStruct((B_pad, E_pad), jnp.float32),
        grid_spec=pltpu.PrefetchScalarGridSpec(
            num_scalar_prefetch=0,
            grid=grid,
            in_specs=[
                pl.BlockSpec((b_tile, L), lambda b, e, k: (b, 0)),       # labels
                pl.BlockSpec((b_tile, 1), lambda b, e, k: (b, 0)),       # lengths
                pl.BlockSpec((v_tile, e_tile), lambda b, e, k: (k, e)),  # table tile
            ],
            out_specs=pl.BlockSpec((b_tile, e_tile), lambda b, e, k: (b, e)),
        ),
        compiler_params=pltpu.CompilerParams(
            dimension_semantics=("parallel", "parallel", "arbitrary"),
            vmem_limit_bytes=vmem_limit),
    )(labels, lens2d, table)

    return out[:B, :E]


def init_bow_params(key, markdown_vocab_size, emb_size, padding_idx):
    # Deterministic init; zero the padding_idx row, matching
    # nn.Embedding(padding_idx=...) forward behavior.
    table = jax.random.normal(key, (markdown_vocab_size, emb_size), dtype=jnp.float32)
    table = table.at[padding_idx].set(0.0)
    return table


if __name__ == "__main__":
    key = jax.random.PRNGKey(0)
    k_emb, k_lab, k_len = jax.random.split(key, 3)

    # Small shapes consistent with the module.
    markdown_vocab_size = 64
    emb_size = 32
    padding_idx = 0
    B, L = 8, 16

    emb_table = init_bow_params(k_emb, markdown_vocab_size, emb_size, padding_idx)

    # Random token ids; positions past each row's length set to padding_idx.
    lengths = jax.random.randint(k_len, (B,), 1, L + 1)                   # [B] in [1, L]
    labels = jax.random.randint(k_lab, (B, L), 1, markdown_vocab_size)    # avoid pad id
    pos = jnp.arange(L)[None, :]
    labels = jnp.where(pos < lengths[:, None], labels, padding_idx).astype(jnp.int32)
    markdown_len = lengths.astype(jnp.float32)

    out = bow_forward(labels, markdown_len, emb_table)
    out = jax.block_until_ready(out)
    assert out.shape == (B, emb_size)

    # The table is fed to the MXU as bf16: tight check vs the bf16-quantized table,
    # looser check vs the full-f32 reference.
    table_q = emb_table.astype(jnp.bfloat16).astype(jnp.float32)
    ref_q = jnp.take(table_q, labels, axis=0).sum(axis=1) / markdown_len[:, None]
    ref_f32 = jnp.take(emb_table, labels, axis=0).sum(axis=1) / markdown_len[:, None]

    assert jnp.allclose(out, ref_q, atol=1e-3, rtol=1e-3)
    assert jnp.allclose(out, ref_f32, atol=5e-2, rtol=5e-2)

    print("KERNEL_OK")
</pallas_src>

<mosaic_0001>
module attributes {stable_mosaic.version = 11 : i64} {
  func.func @bow_kernel(%arg0: i32, %arg1: i32, %arg2: i32, %arg3: memref<8x16xi32, #tpu.memory_space<vmem>>, %arg4: memref<8x1xf32, #tpu.memory_space<vmem>>, %arg5: memref<128x128xbf16, #tpu.memory_space<vmem>>, %arg6: memref<8x128xf32, #tpu.memory_space<vmem>>) attributes {dimension_semantics = [#tpu.dimension_semantics<parallel>, #tpu.dimension_semantics<parallel>, #tpu.dimension_semantics<arbitrary>], iteration_bounds = array<i64: 1, 1, 1>, scalar_prefetch = 0 : i64, scratch_operands = 0 : i64, tpu.core_type = #tpu.core_type<tc>, window_params = [{transform_indices = @transform_0, window_bounds = array<i64: 8, 16>}, {transform_indices = @transform_1, window_bounds = array<i64: 8, 1>}, {transform_indices = @transform_2, window_bounds = array<i64: 128, 128>}, {transform_indices = @transform_3, window_bounds = array<i64: 8, 128>}]} {
    %c0_i32 = arith.constant 0 : i32
    %0 = arith.cmpi eq, %arg2, %c0_i32 : i32
    %1 = arith.extui %0 : i1 to i32
    %c0_i32_0 = arith.constant 0 : i32
    %2 = arith.cmpi ne, %1, %c0_i32_0 : i32
    scf.if %2 {
      %cst_11 = arith.constant 0.000000e+00 : f32
      %114 = vector.broadcast %cst_11 : f32 to vector<8x128xf32>
      %c0_12 = arith.constant 0 : index
      %c0_13 = arith.constant 0 : index
      %115 = vector.load %arg6[%c0_12, %c0_13] : memref<8x128xf32, #tpu.memory_space<vmem>>, vector<8x128xf32>
      tpu.vector_store %arg6[%c0_12, %c0_13], %114 {strides = array<i32>} : memref<8x128xf32, #tpu.memory_space<vmem>>, vector<8x128xf32>,
    } else {
    }
    %c0 = arith.constant 0 : index
    %c0_1 = arith.constant 0 : index
    %3 = vector.load %arg3[%c0, %c0_1] : memref<8x16xi32, #tpu.memory_space<vmem>>, vector<8x16xi32>
    %c128_i32 = arith.constant 128 : i32
    %4 = arith.muli %arg2, %c128_i32 : i32
    %5 = vector.broadcast %4 : i32 to vector<8x16xi32>
    %6 = arith.subi %3, %5 : vector<8x16xi32>
    %7 = tpu.iota {dimensions = array<i32: 1>} : vector<8x128xi32>
    %cst = arith.constant 0.000000e+00 : f32
    %8 = vector.broadcast %cst : f32 to vector<8x128xf32>
    %9 = vector.extract_strided_slice %6 {offsets = [0, 0], sizes = [8, 1], strides = [1, 1]} : vector<8x16xi32> to vector<8x1xi32>
    %10 = vector.broadcast %9 : vector<8x1xi32> to vector<8x128xi32>
    %11 = arith.cmpi eq, %10, %7 : vector<8x128xi32>
    %12 = arith.extui %11 : vector<8x128xi1> to vector<8x128xi32>
    %13 = arith.sitofp %12 : vector<8x128xi32> to vector<8x128xf32>
    %14 = arith.addf %8, %13 : vector<8x128xf32>
    %15 = vector.extract_strided_slice %6 {offsets = [0, 1], sizes = [8, 1], strides = [1, 1]} : vector<8x16xi32> to vector<8x1xi32>
    %16 = vector.broadcast %15 : vector<8x1xi32> to vector<8x128xi32>
    %17 = arith.cmpi eq, %16, %7 : vector<8x128xi32>
    %18 = arith.extui %17 : vector<8x128xi1> to vector<8x128xi32>
    %19 = arith.sitofp %18 : vector<8x128xi32> to vector<8x128xf32>
    %20 = arith.addf %14, %19 : vector<8x128xf32>
    %21 = vector.extract_strided_slice %6 {offsets = [0, 2], sizes = [8, 1], strides = [1, 1]} : vector<8x16xi32> to vector<8x1xi32>
    %22 = vector.broadcast %21 : vector<8x1xi32> to vector<8x128xi32>
    %23 = arith.cmpi eq, %22, %7 : vector<8x128xi32>
    %24 = arith.extui %23 : vector<8x128xi1> to vector<8x128xi32>
    %25 = arith.sitofp %24 : vector<8x128xi32> to vector<8x128xf32>
    %26 = arith.addf %20, %25 : vector<8x128xf32>
    %27 = vector.extract_strided_slice %6 {offsets = [0, 3], sizes = [8, 1], strides = [1, 1]} : vector<8x16xi32> to vector<8x1xi32>
    %28 = vector.broadcast %27 : vector<8x1xi32> to vector<8x128xi32>
    %29 = arith.cmpi eq, %28, %7 : vector<8x128xi32>
    %30 = arith.extui %29 : vector<8x128xi1> to vector<8x128xi32>
    %31 = arith.sitofp %30 : vector<8x128xi32> to vector<8x128xf32>
    %32 = arith.addf %26, %31 : vector<8x128xf32>
    %33 = vector.extract_strided_slice %6 {offsets = [0, 4], sizes = [8, 1], strides = [1, 1]} : vector<8x16xi32> to vector<8x1xi32>
    %34 = vector.broadcast %33 : vector<8x1xi32> to vector<8x128xi32>
    %35 = arith.cmpi eq, %34, %7 : vector<8x128xi32>
    %36 = arith.extui %35 : vector<8x128xi1> to vector<8x128xi32>
    %37 = arith.sitofp %36 : vector<8x128xi32> to vector<8x128xf32>
    %38 = arith.addf %32, %37 : vector<8x128xf32>
    %39 = vector.extract_strided_slice %6 {offsets = [0, 5], sizes = [8, 1], strides = [1, 1]} : vector<8x16xi32> to vector<8x1xi32>
    %40 = vector.broadcast %39 : vector<8x1xi32> to vector<8x128xi32>
    %41 = arith.cmpi eq, %40, %7 : vector<8x128xi32>
    %42 = arith.extui %41 : vector<8x128xi1> to vector<8x128xi32>
    %43 = arith.sitofp %42 : vector<8x128xi32> to vector<8x128xf32>
    %44 = arith.addf %38, %43 : vector<8x128xf32>
    %45 = vector.extract_strided_slice %6 {offsets = [0, 6], sizes = [8, 1], strides = [1, 1]} : vector<8x16xi32> to vector<8x1xi32>
    %46 = vector.broadcast %45 : vector<8x1xi32> to vector<8x128xi32>
    %47 = arith.cmpi eq, %46, %7 : vector<8x128xi32>
    %48 = arith.extui %47 : vector<8x128xi1> to vector<8x128xi32>
    %49 = arith.sitofp %48 : vector<8x128xi32> to vector<8x128xf32>
    %50 = arith.addf %44, %49 : vector<8x128xf32>
    %51 = vector.extract_strided_slice %6 {offsets = [0, 7], sizes = [8, 1], strides = [1, 1]} : vector<8x16xi32> to vector<8x1xi32>
    %52 = vector.broadcast %51 : vector<8x1xi32> to vector<8x128xi32>
    %53 = arith.cmpi eq, %52, %7 : vector<8x128xi32>
    %54 = arith.extui %53 : vector<8x128xi1> to vector<8x128xi32>
    %55 = arith.sitofp %54 : vector<8x128xi32> to vector<8x128xf32>
    %56 = arith.addf %50, %55 : vector<8x128xf32>
    %57 = vector.extract_strided_slice %6 {offsets = [0, 8], sizes = [8, 1], strides = [1, 1]} : vector<8x16xi32> to vector<8x1xi32>
    %58 = vector.broadcast %57 : vector<8x1xi32> to vector<8x128xi32>
    %59 = arith.cmpi eq, %58, %7 : vector<8x128xi32>
    %60 = arith.extui %59 : vector<8x128xi1> to vector<8x128xi32>
    %61 = arith.sitofp %60 : vector<8x128xi32> to vector<8x128xf32>
    %62 = arith.addf %56, %61 : vector<8x128xf32>
    %63 = vector.extract_strided_slice %6 {offsets = [0, 9], sizes = [8, 1], strides = [1, 1]} : vector<8x16xi32> to vector<8x1xi32>
    %64 = vector.broadcast %63 : vector<8x1xi32> to vector<8x128xi32>
    %65 = arith.cmpi eq, %64, %7 : vector<8x128xi32>
    %66 = arith.extui %65 : vector<8x128xi1> to vector<8x128xi32>
    %67 = arith.sitofp %66 : vector<8x128xi32> to vector<8x128xf32>
    %68 = arith.addf %62, %67 : vector<8x128xf32>
    %69 = vector.extract_strided_slice %6 {offsets = [0, 10], sizes = [8, 1], strides = [1, 1]} : vector<8x16xi32> to vector<8x1xi32>
    %70 = vector.broadcast %69 : vector<8x1xi32> to vector<8x128xi32>
    %71 = arith.cmpi eq, %70, %7 : vector<8x128xi32>
    %72 = arith.extui %71 : vector<8x128xi1> to vector<8x128xi32>
    %73 = arith.sitofp %72 : vector<8x128xi32> to vector<8x128xf32>
    %74 = arith.addf %68, %73 : vector<8x128xf32>
    %75 = vector.extract_strided_slice %6 {offsets = [0, 11], sizes = [8, 1], strides = [1, 1]} : vector<8x16xi32> to vector<8x1xi32>
    %76 = vector.broadcast %75 : vector<8x1xi32> to vector<8x128xi32>
    %77 = arith.cmpi eq, %76, %7 : vector<8x128xi32>
    %78 = arith.extui %77 : vector<8x128xi1> to vector<8x128xi32>
    %79 = arith.sitofp %78 : vector<8x128xi32> to vector<8x128xf32>
    %80 = arith.addf %74, %79 : vector<8x128xf32>
    %81 = vector.extract_strided_slice %6 {offsets = [0, 12], sizes = [8, 1], strides = [1, 1]} : vector<8x16xi32> to vector<8x1xi32>
    %82 = vector.broadcast %81 : vector<8x1xi32> to vector<8x128xi32>
    %83 = arith.cmpi eq, %82, %7 : vector<8x128xi32>
    %84 = arith.extui %83 : vector<8x128xi1> to vector<8x128xi32>
    %85 = arith.sitofp %84 : vector<8x128xi32> to vector<8x128xf32>
    %86 = arith.addf %80, %85 : vector<8x128xf32>
    %87 = vector.extract_strided_slice %6 {offsets = [0, 13], sizes = [8, 1], strides = [1, 1]} : vector<8x16xi32> to vector<8x1xi32>
    %88 = vector.broadcast %87 : vector<8x1xi32> to vector<8x128xi32>
    %89 = arith.cmpi eq, %88, %7 : vector<8x128xi32>
    %90 = arith.extui %89 : vector<8x128xi1> to vector<8x128xi32>
    %91 = arith.sitofp %90 : vector<8x128xi32> to vector<8x128xf32>
    %92 = arith.addf %86, %91 : vector<8x128xf32>
    %93 = vector.extract_strided_slice %6 {offsets = [0, 14], sizes = [8, 1], strides = [1, 1]} : vector<8x16xi32> to vector<8x1xi32>
    %94 = vector.broadcast %93 : vector<8x1xi32> to vector<8x128xi32>
    %95 = arith.cmpi eq, %94, %7 : vector<8x128xi32>
    %96 = arith.extui %95 : vector<8x128xi1> to vector<8x128xi32>
    %97 = arith.sitofp %96 : vector<8x128xi32> to vector<8x128xf32>
    %98 = arith.addf %92, %97 : vector<8x128xf32>
    %99 = vector.extract_strided_slice %6 {offsets = [0, 15], sizes = [8, 1], strides = [1, 1]} : vector<8x16xi32> to vector<8x1xi32>
    %100 = vector.broadcast %99 : vector<8x1xi32> to vector<8x128xi32>
    %101 = arith.cmpi eq, %100, %7 : vector<8x128xi32>
    %102 = arith.extui %101 : vector<8x128xi1> to vector<8x128xi32>
    %103 = arith.sitofp %102 : vector<8x128xi32> to vector<8x128xf32>
    %104 = arith.addf %98, %103 : vector<8x128xf32>
    %105 = arith.truncf %104 : vector<8x128xf32> to vector<8x128xbf16>
    %c0_2 = arith.constant 0 : index
    %c0_3 = arith.constant 0 : index
    %106 = vector.load %arg6[%c0_2, %c0_3] : memref<8x128xf32, #tpu.memory_space<vmem>>, vector<8x128xf32>
    %c0_4 = arith.constant 0 : index
    %c0_5 = arith.constant 0 : index
    %107 = vector.load %arg5[%c0_4, %c0_5] : memref<128x128xbf16, #tpu.memory_space<vmem>>, vector<128x128xbf16>
    %cst_6 = arith.constant dense<0.000000e+00> : vector<8x128xf32>
    %108 = tpu.matmul %105, %107, %cst_6 {dimension_numbers = #tpu.dot_dimension_numbers<[1], [0], [0], [1], [0, 0, 1, 1], [], []>} : vector<8x128xbf16>, vector<128x128xbf16>, vector<8x128xf32> -> vector<8x128xf32>
    %109 = arith.addf %106, %108 : vector<8x128xf32>
    %c0_7 = arith.constant 0 : index
    %c0_8 = arith.constant 0 : index
    %110 = vector.load %arg6[%c0_7, %c0_8] : memref<8x128xf32, #tpu.memory_space<vmem>>, vector<8x128xf32>
    tpu.vector_store %arg6[%c0_7, %c0_8], %109 {strides = array<i32>} : memref<8x128xf32, #tpu.memory_space<vmem>>, vector<8x128xf32>,
    %c0_i32_9 = arith.constant 0 : i32
    %111 = arith.cmpi eq, %arg2, %c0_i32_9 : i32
    %112 = arith.extui %111 : i1 to i32
    %c0_i32_10 = arith.constant 0 : i32
    %113 = arith.cmpi ne, %112, %c0_i32_10 : i32
    scf.if %113 {
      %c0_11 = arith.constant 0 : index
      %c0_12 = arith.constant 0 : index
      %114 = vector.load %arg4[%c0_11, %c0_12] : memref<8x1xf32, #tpu.memory_space<vmem>>, vector<8x1xf32>
      %115 = tpu.reciprocal %114 : vector<8x1xf32> -> vector<8x1xf32>
      %c0_13 = arith.constant 0 : index
      %c0_14 = arith.constant 0 : index
      %116 = vector.load %arg6[%c0_13, %c0_14] : memref<8x128xf32, #tpu.memory_space<vmem>>, vector<8x128xf32>
      %117 = vector.broadcast %115 : vector<8x1xf32> to vector<8x128xf32>
      %118 = arith.mulf %116, %117 : vector<8x128xf32>
      %c0_15 = arith.constant 0 : index
      %c0_16 = arith.constant 0 : index
      %119 = vector.load %arg6[%c0_15, %c0_16] : memref<8x128xf32, #tpu.memory_space<vmem>>, vector<8x128xf32>
      tpu.vector_store %arg6[%c0_15, %c0_16], %118 {strides = array<i32>} : memref<8x128xf32, #tpu.memory_space<vmem>>, vector<8x128xf32>,
    } else {
    }
    return
  }
  func.func @transform_0(%arg0: i32, %arg1: i32, %arg2: i32) -> (i32, i32) {
    %c0_i32 = arith.constant 0 : i32
    %c0_i32_0 = arith.constant 0 : i32
    return %arg0, %c0_i32 : i32, i32
  }
  func.func @transform_1(%arg0: i32, %arg1: i32, %arg2: i32) -> (i32, i32) {
    %c0_i32 = arith.constant 0 : i32
    %c0_i32_0 = arith.constant 0 : i32
    return %arg0, %c0_i32 : i32, i32
  }
  func.func @transform_2(%arg0: i32, %arg1: i32, %arg2: i32) -> (i32, i32) {
    %c0_i32 = arith.constant 0 : i32
    return %arg2, %arg1 : i32, i32
  }
  func.func @transform_3(%arg0: i32, %arg1: i32, %arg2: i32) -> (i32, i32) {
    %c0_i32 = arith.constant 0 : i32
    return %arg0, %arg1 : i32, i32
  }
}

</mosaic_0001>

<llo_original>
// kernel: tpu_custom_call.1
$region0: #{tpu_custom_call.1}
  #allocation0 [shape = 'u32[]', space=smem, size = 0x4, offset = 0x4, fixed_abs, tag = 'smem constant byte address 0x4 - core index']
  #allocation1 [shape = 'u32[144,128]{1,0:T(1,128)}', space=vmem, size = 0x12000, scoped, tag = 'internal scratch']
  %s0 = inlined_call_operand.vmem [shape: s32[8,16], index: 0, kind: input, shape index: {}]
  %s1 = inlined_call_operand.vmem [shape: f32[8,1], index: 1, kind: input, shape index: {}]
  %s2 = inlined_call_operand.hbm [shape: bf16[128,128], index: 2, kind: input, shape index: {}]
  %s3 = inlined_call_operand.hbm [shape: f32[8,128], index: 3, kind: output, shape index: {}]
  %s4 = sld [smem:[#allocation0]]
  $region34: #{tpu_custom_call.1} parent=0
    _
  %s6 = ssub.s32 1, %s4
  %s7 = scalar_select 0, %s6, %s4
  $region1: #{tpu_custom_call.1} parent=0
    #allocation2 [shape = 'u8[32768]{0}', space=vmem, size = 0x8000, scoped, tag = 'input window, operand 2, single buffered']
    #allocation3 [shape = 's32[1]{0}', space=sflag, size = 0x4, scoped, tag = 'scoped memory for tpu_custom_call.1']
    #allocation4 [shape = 's32[1]{0}', space=sflag, size = 0x4, scoped, tag = 'scoped memory for tpu_custom_call.1']
    #allocation5 [shape = 'u8[4096]{0}', space=vmem, size = 0x1000, scoped, tag = 'output window, operand 0, single buffered']
    %8 = vsyncpa [#allocation3], 0
    %9 = vsyncpa [#allocation4], 0
    // Predicated region
    $region2: #{tpu_custom_call.1} parent=1 // pred_check
      _
    $region3: #{tpu_custom_call.1} parent=1 // pred_check_branch
      %11 = sbr.rel (0) target = $region5
    $region4: #{tpu_custom_call.1} parent=1 // pred_region
      _
    $region5: #{tpu_custom_call.1} parent=1 // pred_fallthru
      _
    // Predicated region
    $region6: #{tpu_custom_call.1} parent=1 // pred_check
      _
    $region7: #{tpu_custom_call.1} parent=1 // pred_check_branch
      %13 = sbr.rel (0) target = $region9
    $region8: #{tpu_custom_call.1} parent=1 // pred_region
      _
    $region9: #{tpu_custom_call.1} parent=1 // pred_fallthru
      _
    // Predicated region
    $region10: #{tpu_custom_call.1} parent=1 // pred_check
      _
    $region11: #{tpu_custom_call.1} parent=1 // pred_check_branch
      %15 = sbr.rel (0) target = $region13
    $region12: #{tpu_custom_call.1} parent=1 // pred_region
      %s17 = ssub.s32 1024, 1024
      %18 = vsyncadd [#allocation3], %s17
      %s19 = sshll.u32 [#allocation2], 4
      %s20 = int_to_ptr.vmem [resolvable:$true] %s19
      %25 = dma.hbm_to_vmem [thread:$0]  %s2, 1024, %s20, [#allocation3], 64, 64, 4
    $region13: #{tpu_custom_call.1} parent=1 // pred_fallthru
      _
    // Predicated region
    $region14: #{tpu_custom_call.1} parent=1 // pred_check
      _
    $region15: #{tpu_custom_call.1} parent=1 // pred_check_branch
      %27 = sbr.rel (0) target = $region17
    $region16: #{tpu_custom_call.1} parent=1 // pred_region
      %28 = dma.done [#allocation3], 1024
    $region17: #{tpu_custom_call.1} parent=1 // pred_fallthru
      _
    %p30 = scmp.eq.s32.totalorder 0, 0
    // Predicated region
    $region18: #{tpu_custom_call.1} parent=1 // pred_check
      %p31 = pneg %p30
    $region19: #{tpu_custom_call.1} parent=1 // pred_check_branch
      %33 = sbr.rel (%p31) target = $region21
    $region20: #{tpu_custom_call.1} parent=1 // pred_region
      %34 = vst [vmem:[#allocation5] sm:$0xff] 0.0
    $region21: #{tpu_custom_call.1} parent=1 // pred_fallthru
      _
    %v35 = vld [vmem:[%s0] sm:$0xff]
    %s36 = smul.u32 0, 128
    %v37 = vstv %s36
    %v38 = vsub.s32 %v35, %v37
    %v39 = vlaneseq
    %v40 = vand.u32 %v39, 127
    %41 = vset.pattern.permute.xlu0 0
    %42 = vperm.xlu0 %41, %v38
    %v43 = vpop.permute.xlu0 %42
    %vm44 = vcmp.eq.s32.totalorder %v43, %v40
    %v45 = vsel %vm44, 1, 0
    %v46 = vcvt.s32.f32 %v45
    %v47 = vadd.f32 %v46, 0.0
    %48 = vset.pattern.permute.xlu0 1
    %49 = vperm.xlu0 %48, %v38
    %v50 = vpop.permute.xlu0 %49
    %vm51 = vcmp.eq.s32.totalorder %v50, %v40
    %v52 = vsel %vm51, 1, 0
    %v53 = vcvt.s32.f32 %v52
    %v54 = vadd.f32 %v47, %v53
    %55 = vset.pattern.permute.xlu0 2
    %56 = vperm.xlu0 %55, %v38
    %v57 = vpop.permute.xlu0 %56
    %vm58 = vcmp.eq.s32.totalorder %v57, %v40
    %v59 = vsel %vm58, 1, 0
    %v60 = vcvt.s32.f32 %v59
    %v61 = vadd.f32 %v54, %v60
    %62 = vset.pattern.permute.xlu0 3
    %63 = vperm.xlu0 %62, %v38
    %v64 = vpop.permute.xlu0 %63
    %vm65 = vcmp.eq.s32.totalorder %v64, %v40
    %v66 = vsel %vm65, 1, 0
    %v67 = vcvt.s32.f32 %v66
    %v68 = vadd.f32 %v61, %v67
    %69 = vset.pattern.permute.xlu0 4
    %70 = vperm.xlu0 %69, %v38
    %v71 = vpop.permute.xlu0 %70
    %vm72 = vcmp.eq.s32.totalorder %v71, %v40
    %v73 = vsel %vm72, 1, 0
    %v74 = vcvt.s32.f32 %v73
    %v75 = vadd.f32 %v68, %v74
    %76 = vset.pattern.permute.xlu0 5
    %77 = vperm.xlu0 %76, %v38
    %v78 = vpop.permute.xlu0 %77
    %vm79 = vcmp.eq.s32.totalorder %v78, %v40
    %v80 = vsel %vm79, 1, 0
    %v81 = vcvt.s32.f32 %v80
    %v82 = vadd.f32 %v75, %v81
    %83 = vset.pattern.permute.xlu0 6
    %84 = vperm.xlu0 %83, %v38
    %v85 = vpop.permute.xlu0 %84
    %vm86 = vcmp.eq.s32.totalorder %v85, %v40
    %v87 = vsel %vm86, 1, 0
    %v88 = vcvt.s32.f32 %v87
    %v89 = vadd.f32 %v82, %v88
    %90 = vset.pattern.permute.xlu0 7
    %91 = vperm.xlu0 %90, %v38
    %v92 = vpop.permute.xlu0 %91
    %vm93 = vcmp.eq.s32.totalorder %v92, %v40
    %v94 = vsel %vm93, 1, 0
    %v95 = vcvt.s32.f32 %v94
    %v96 = vadd.f32 %v89, %v95
    %97 = vset.pattern.permute.xlu0 8
    %98 = vperm.xlu0 %97, %v38
    %v99 = vpop.permute.xlu0 %98
    %vm100 = vcmp.eq.s32.totalorder %v99, %v40
    %v101 = vsel %vm100, 1, 0
    %v102 = vcvt.s32.f32 %v101
    %v103 = vadd.f32 %v96, %v102
    %104 = vset.pattern.permute.xlu0 9
    %105 = vperm.xlu0 %104, %v38
    %v106 = vpop.permute.xlu0 %105
    %vm107 = vcmp.eq.s32.totalorder %v106, %v40
    %v108 = vsel %vm107, 1, 0
    %v109 = vcvt.s32.f32 %v108
    %v110 = vadd.f32 %v103, %v109
    %111 = vset.pattern.permute.xlu0 10
    %112 = vperm.xlu0 %111, %v38
    %v113 = vpop.permute.xlu0 %112
    %vm114 = vcmp.eq.s32.totalorder %v113, %v40
    %v115 = vsel %vm114, 1, 0
    %v116 = vcvt.s32.f32 %v115
    %v117 = vadd.f32 %v110, %v116
    %118 = vset.pattern.permute.xlu0 11
    %119 = vperm.xlu0 %118, %v38
    %v120 = vpop.permute.xlu0 %119
    %vm121 = vcmp.eq.s32.totalorder %v120, %v40
    %v122 = vsel %vm121, 1, 0
    %v123 = vcvt.s32.f32 %v122
    %v124 = vadd.f32 %v117, %v123
    %125 = vset.pattern.permute.xlu0 12
    %126 = vperm.xlu0 %125, %v38
    %v127 = vpop.permute.xlu0 %126
    %vm128 = vcmp.eq.s32.totalorder %v127, %v40
    %v129 = vsel %vm128, 1, 0
    %v130 = vcvt.s32.f32 %v129
    %v131 = vadd.f32 %v124, %v130
    %132 = vset.pattern.permute.xlu0 13
    %133 = vperm.xlu0 %132, %v38
    %v134 = vpop.permute.xlu0 %133
    %vm135 = vcmp.eq.s32.totalorder %v134, %v40
    %v136 = vsel %vm135, 1, 0
    %v137 = vcvt.s32.f32 %v136
    %v138 = vadd.f32 %v131, %v137
    %139 = vset.pattern.permute.xlu0 14
    %140 = vperm.xlu0 %139, %v38
    %v141 = vpop.permute.xlu0 %140
    %vm142 = vcmp.eq.s32.totalorder %v141, %v40
    %v143 = vsel %vm142, 1, 0
    %v144 = vcvt.s32.f32 %v143
    %v145 = vadd.f32 %v138, %v144
    %146 = vset.pattern.permute.xlu0 15
    %147 = vperm.xlu0 %146, %v38
    %v148 = vpop.permute.xlu0 %147
    %vm149 = vcmp.eq.s32.totalorder %v148, %v40
    %v150 = vsel %vm149, 1, 0
    %v151 = vcvt.s32.f32 %v150
    %v152 = vadd.f32 %v145, %v151
    %v153 = vpack.c.bf16 %v152, %v152
    %v154 = vld [vmem:[#allocation5] sm:$0xff]
    %v155 = vld [vmem:[#allocation2] sm:$0xf]
    %v156 = vld [vmem:[#allocation2 + $0x4] sm:$0xf]
    %v157 = vld [vmem:[#allocation2 + $0x8] sm:$0xf]
    %v158 = vld [vmem:[#allocation2 + $0xc] sm:$0xf]
    %v159 = vld [vmem:[#allocation2 + $0x10] sm:$0xf]
    %v160 = vld [vmem:[#allocation2 + $0x14] sm:$0xf]
    %v161 = vld [vmem:[#allocation2 + $0x18] sm:$0xf]
    %v162 = vld [vmem:[#allocation2 + $0x1c] sm:$0xf]
    %v163 = vld [vmem:[#allocation2 + $0x20] sm:$0xf]
    %v164 = vld [vmem:[#allocation2 + $0x24] sm:$0xf]
    %v165 = vld [vmem:[#allocation2 + $0x28] sm:$0xf]
    %v166 = vld [vmem:[#allocation2 + $0x2c] sm:$0xf]
    %v167 = vld [vmem:[#allocation2 + $0x30] sm:$0xf]
    %v168 = vld [vmem:[#allocation2 + $0x34] sm:$0xf]
    %v169 = vld [vmem:[#allocation2 + $0x38] sm:$0xf]
    %v170 = vld [vmem:[#allocation2 + $0x3c] sm:$0xf]
    %v187 = vunpack.c.l.b16 %v155
    %v188 = vunpack.c.l.b16 %v156
    %v189 = vunpack.c.l.b16 %v157
    %v190 = vunpack.c.l.b16 %v158
    %v191 = vunpack.c.l.b16 %v159
    %v192 = vunpack.c.l.b16 %v160
    %v193 = vunpack.c.l.b16 %v161
    %v194 = vunpack.c.l.b16 %v162
    %v195 = vunpack.c.l.b16 %v163
    %v196 = vunpack.c.l.b16 %v164
    %v197 = vunpack.c.l.b16 %v165
    %v198 = vunpack.c.l.b16 %v166
    %v199 = vunpack.c.l.b16 %v167
    %v200 = vunpack.c.l.b16 %v168
    %v201 = vunpack.c.l.b16 %v169
    %v202 = vunpack.c.l.b16 %v170
    %v203 = vpack.c.b16 %v188, %v187
    %v204 = vpack.c.b16 %v190, %v189
    %v205 = vpack.c.b16 %v192, %v191
    %v206 = vpack.c.b16 %v194, %v193
    %v207 = vpack.c.b16 %v196, %v195
    %v208 = vpack.c.b16 %v198, %v197
    %v209 = vpack.c.b16 %v200, %v199
    %v210 = vpack.c.b16 %v202, %v201
    %219 = vmatprep.subr.bf16.mxu0 0
    %220 = vmatpush1.bf16.msra.mxu0 %v203
    %221 = vmatprep.subr.bf16.mxu0 0
    %222 = vmatpush1.bf16.msra.mxu0 %v204
    %223 = vmatprep.subr.bf16.mxu0 0
    %224 = vmatpush1.bf16.msra.mxu0 %v205
    %225 = vmatprep.subr.bf16.mxu0 0
    %226 = vmatpush1.bf16.msra.mxu0 %v206
    %227 = vmatprep.subr.bf16.mxu0 0
    %228 = vmatpush1.bf16.msra.mxu0 %v207
    %229 = vmatprep.subr.bf16.mxu0 0
    %230 = vmatpush1.bf16.msra.mxu0 %v208
    %231 = vmatprep.subr.bf16.mxu0 0
    %232 = vmatpush1.bf16.msra.mxu0 %v209
    %233 = vmatprep.subr.bf16.mxu0 0
    %234 = vmatpush1.bf16.msra.mxu0 %v210
    %235 = vmatprep.subr.bf16.mxu0 0
    %236 = vmatpush1.bf16.msra.mxu0 0
    %237 = vmatprep.subr.bf16.mxu0 0
    %238 = vmatpush1.bf16.msra.mxu0 0
    %239 = vmatprep.subr.bf16.mxu0 0
    %240 = vmatpush1.bf16.msra.mxu0 0
    %241 = vmatprep.subr.bf16.mxu0 0
    %242 = vmatpush1.bf16.msra.mxu0 0
    %243 = vmatprep.subr.bf16.mxu0 0
    %244 = vmatpush1.bf16.msra.mxu0 0
    %245 = vmatprep.subr.bf16.mxu0 0
    %246 = vmatpush1.bf16.msra.mxu0 0
    %247 = vmatprep.subr.bf16.mxu0 0
    %248 = vmatpush1.bf16.msra.mxu0 0
    %249 = vmatprep.subr.bf16.mxu0 0
    %250 = vmatpush1.bf16.msra.mxu0 0
    %251 = vmatprep.mubr.bf16.mxu0 0
    %252 = vmatmul.mubr.bf16.gmra.mrb[0].mxu0 %v153
    %v253 = vpop.f32.mrb[0].mxu0
    %v254 = vadd.f32 0.0, %v253
    %v255 = vpop.f32.mrb[0].mxu0
    %v256 = vpop.f32.mrb[0].mxu0
    %v257 = vpop.f32.mrb[0].mxu0
    %258 = vdwg.mxu0
    %v259 = vadd.f32 %v154, %v254
    %260 = vst [vmem:[#allocation5] sm:$0xff] %v259
    // Predicated region
    $region22: #{tpu_custom_call.1} parent=1 // pred_check
      %p261 = pneg %p30
    $region23: #{tpu_custom_call.1} parent=1 // pred_check_branch
      %263 = sbr.rel (%p261) target = $region25
    $region24: #{tpu_custom_call.1} parent=1 // pred_region
      %v264 = vld [vmem:[%s1] sm:$0xff]
      %v265 = vrcp.pop %v264
      %v266 = vld [vmem:[#allocation5] sm:$0xff]
      %268 = vset.pattern.permute.xlu0 0
      %269 = vperm.xlu0 %268, %v265
      %v270 = vpop.permute.xlu0 %269
      %v272 = vmul.f32 %v266, %v270
      %273 = vst [vmem:[#allocation5] sm:$0xff] %v272
    $region25: #{tpu_custom_call.1} parent=1 // pred_fallthru
      _
    // Predicated region
    $region26: #{tpu_custom_call.1} parent=1 // pred_check
      _
    $region27: #{tpu_custom_call.1} parent=1 // pred_check_branch
      %275 = sbr.rel (0) target = $region29
    $region28: #{tpu_custom_call.1} parent=1 // pred_region
      %s277 = ssub.s32 128, 128
      %278 = vsyncadd [#allocation4], %s277
      %s280 = sshll.u32 [#allocation5], 4
      %s281 = int_to_ptr.vmem [resolvable:$true] %s280
      %283 = dma.vmem_to_hbm [thread:$0]  %s281, 128, %s3, [#allocation4]
    $region29: #{tpu_custom_call.1} parent=1 // pred_fallthru
      _
    // Predicated region
    $region30: #{tpu_custom_call.1} parent=1 // pred_check
      _
    $region31: #{tpu_custom_call.1} parent=1 // pred_check_branch
      %285 = sbr.rel (0) target = $region33
    $region32: #{tpu_custom_call.1} parent=1 // pred_region
      %286 = dma.done [#allocation4], 128
    $region33: #{tpu_custom_call.1} parent=1 // pred_fallthru
      _
    %287 = vsyncpa [#allocation3], 1
    %288 = vsyncpa [#allocation4], 1

</llo_original>
